<compile_context>
chip_gen: v7x
topology: tpu7x:2x2x1
jax: 0.10.0
libtpu: 0.0.40
codegen_flags: <defaults>
</compile_context>

<pallas_src>
import jax
import jax.numpy as jnp
from jax.experimental import pallas as pl
from jax.experimental.pallas import tpu as pltpu

_LANES = 512            # lane-dense last dim (multiple of 128)
_MAX_BLOCK_ROWS = 256   # 256*512*4B = 512 KiB per f32 tile; fits 2x-buffered on v5e/v6e/v7x


def _round_up(x: int, m: int) -> int:
    return ((x + m - 1) // m) * m


def _partial_sum_kernel(x_ref, out_ref):
    # x_ref: (block_rows, _LANES) slab of last-channel probabilities.
    x = x_ref[...].astype(jnp.float32)
    neg_log = -jnp.log(1.0 - x)              # EUP log; padded zeros give -log(1) = 0
    rows, lanes = x_ref.shape
    # Pure-VPU partial reduction: fold 8-row groups onto each other. The
    # expensive cross-lane/sublane reduce happens exactly once, outside.
    out_ref[...] = neg_log.reshape(rows // 8, 8, lanes).sum(axis=0)


def semi_supervised_unlabeled_loss(inputs, size_average: bool = True):
    """inputs: (N, C, H, W) array. Returns scalar -log(1 - inputs[:, -1]) mean/sum."""
    n, c, h, w = inputs.shape
    total = n * h * w

    # Only the last channel is ever read -> slice it before the pallas_call and
    # present a lane-dense 2-D slab (layout plumbing done once by XLA).
    p_last = inputs[:, c - 1, :, :].reshape(-1)

    rows = _round_up(total, _LANES) // _LANES
    block_rows = min(_MAX_BLOCK_ROWS, _round_up(max(rows, 1), 8))
    rows_padded = _round_up(rows, block_rows)
    padded = rows_padded * _LANES
    if padded != total:
        # pad with p = 0  ->  -log(1 - 0) = 0 contribution to the sum
        p_last = jnp.pad(p_last, (0, padded - total))
    x2d = p_last.reshape(rows_padded, _LANES)
    num_blocks = rows_padded // block_rows

    cost = pl.CostEstimate(
        flops=2 * padded,
        transcendentals=padded,
        bytes_accessed=padded * x2d.dtype.itemsize + num_blocks * 8 * _LANES * 4,
    )

    partials = pl.pallas_call(
        _partial_sum_kernel,
        out_shape=jax.ShapeDtypeStruct((num_blocks * 8, _LANES), jnp.float32),
        grid_spec=pltpu.PrefetchScalarGridSpec(
            num_scalar_prefetch=0,
            grid=(num_blocks,),
            in_specs=[pl.BlockSpec((block_rows, _LANES), lambda i: (i, 0))],
            out_specs=pl.BlockSpec((8, _LANES), lambda i: (i, 0)),
        ),
        compiler_params=pltpu.CompilerParams(
            dimension_semantics=("parallel",),
        ),
        cost_estimate=cost,
    )(x2d)

    loss_sum = jnp.sum(partials)
    if size_average:
        return loss_sum / total
    return loss_sum


def _reference(inputs, size_average=True):
    probs = 1.0 - inputs[:, -1, :, :].reshape(-1)
    batch_loss = -jnp.log(probs)
    return batch_loss.mean() if size_average else batch_loss.sum()


if __name__ == "__main__":
    # class_num = 2 + 1 = 3 channels, as in the module's __init__.
    N, C, H, W = 2, 3, 16, 16
    key = jax.random.PRNGKey(0)
    logits = jax.random.normal(key, (N, C, H, W), dtype=jnp.float32)
    # Channel-wise probabilities so 1 - p_last is in (0, 1) and log is valid.
    inputs = jax.nn.softmax(logits, axis=1)

    loss_mean = semi_supervised_unlabeled_loss(inputs, size_average=True)
    loss_sum = semi_supervised_unlabeled_loss(inputs, size_average=False)
    jax.block_until_ready(loss_mean)
    jax.block_until_ready(loss_sum)

    ref_mean = _reference(inputs, size_average=True)
    ref_sum = _reference(inputs, size_average=False)
    assert jnp.allclose(loss_mean, ref_mean, rtol=1e-5, atol=1e-5), (loss_mean, ref_mean)
    assert jnp.allclose(loss_sum, ref_sum, rtol=1e-5, atol=1e-4), (loss_sum, ref_sum)

    print("KERNEL_OK")
</pallas_src>

<mosaic_0001>
module attributes {stable_mosaic.version = 11 : i64} {
  func.func @_partial_sum_kernel(%arg0: i32, %arg1: memref<8x512xf32, #tpu.memory_space<vmem>>, %arg2: memref<8x512xf32, #tpu.memory_space<vmem>>) attributes {dimension_semantics = [#tpu.dimension_semantics<parallel>], iteration_bounds = array<i64: 1>, scalar_prefetch = 0 : i64, scratch_operands = 0 : i64, tpu.core_type = #tpu.core_type<tc>, window_params = [{transform_indices = @transform_0, window_bounds = array<i64: 8, 512>}, {transform_indices = @transform_1, window_bounds = array<i64: 8, 512>}]} {
    %c0 = arith.constant 0 : index
    %c0_0 = arith.constant 0 : index
    %0 = vector.load %arg1[%c0, %c0_0] : memref<8x512xf32, #tpu.memory_space<vmem>>, vector<8x512xf32>
    %cst = arith.constant 1.000000e+00 : f32
    %1 = vector.broadcast %cst : f32 to vector<8x512xf32>
    %2 = arith.subf %1, %0 : vector<8x512xf32>
    %3 = math.log %2 : vector<8x512xf32>
    %cst_1 = arith.constant 0.000000e+00 : f32
    %4 = vector.broadcast %cst_1 : f32 to vector<8x512xf32>
    %5 = arith.subf %4, %3 : vector<8x512xf32>
    %6 = vector.shape_cast %5 : vector<8x512xf32> to vector<1x8x512xf32>
    %cst_2 = arith.constant dense<0.000000e+00> : vector<8x512xf32>
    %7 = vector.multi_reduction <add>, %6, %cst_2 [0] : vector<1x8x512xf32> to vector<8x512xf32>
    %c0_3 = arith.constant 0 : index
    %c0_4 = arith.constant 0 : index
    %8 = vector.load %arg2[%c0_3, %c0_4] : memref<8x512xf32, #tpu.memory_space<vmem>>, vector<8x512xf32>
    tpu.vector_store %arg2[%c0_3, %c0_4], %7 {strides = array<i32>} : memref<8x512xf32, #tpu.memory_space<vmem>>, vector<8x512xf32>,
    return
  }
  func.func @transform_0(%arg0: i32) -> (i32, i32) {
    %c0_i32 = arith.constant 0 : i32
    %c0_i32_0 = arith.constant 0 : i32
    return %arg0, %c0_i32 : i32, i32
  }
  func.func @transform_1(%arg0: i32) -> (i32, i32) {
    %c0_i32 = arith.constant 0 : i32
    %c0_i32_0 = arith.constant 0 : i32
    return %arg0, %c0_i32 : i32, i32
  }
}

</mosaic_0001>

<llo_original>
// kernel: tpu_custom_call.1
$region0: #{tpu_custom_call.1}
  #allocation0 [shape = 'u32[]', space=smem, size = 0x4, offset = 0x4, fixed_abs, tag = 'smem constant byte address 0x4 - core index']
  #allocation1 [shape = 'u32[144,128]{1,0:T(1,128)}', space=vmem, size = 0x12000, scoped, tag = 'internal scratch']
  %s0 = inlined_call_operand.hbm [shape: f32[8,512], index: 0, kind: input, shape index: {}]
  %s1 = inlined_call_operand.hbm [shape: f32[8,512], index: 1, kind: output, shape index: {}]
  %s2 = sld [smem:[#allocation0]]
  $region18: #{tpu_custom_call.1} parent=0
    _
  %s4 = ssub.s32 1, %s2
  %s5 = scalar_select 0, %s4, %s2
  $region1: #{tpu_custom_call.1} parent=0
    #allocation2 [shape = 'u8[16384]{0}', space=vmem, size = 0x4000, scoped, tag = 'input window, operand 0, single buffered']
    #allocation3 [shape = 's32[1]{0}', space=sflag, size = 0x4, scoped, tag = 'scoped memory for tpu_custom_call.1']
    #allocation4 [shape = 's32[1]{0}', space=sflag, size = 0x4, scoped, tag = 'scoped memory for tpu_custom_call.1']
    #allocation5 [shape = 'u8[16384]{0}', space=vmem, size = 0x4000, scoped, tag = 'output window, operand 0, single buffered']
    %6 = vsyncpa [#allocation3], 0
    %7 = vsyncpa [#allocation4], 0
    // Predicated region
    $region2: #{tpu_custom_call.1} parent=1 // pred_check
      _
    $region3: #{tpu_custom_call.1} parent=1 // pred_check_branch
      %9 = sbr.rel (0) target = $region5
    $region4: #{tpu_custom_call.1} parent=1 // pred_region
      %s11 = ssub.s32 512, 512
      %12 = vsyncadd [#allocation3], %s11
      %s14 = sshll.u32 [#allocation2], 4
      %s15 = int_to_ptr.vmem [resolvable:$true] %s14
      %17 = dma.hbm_to_vmem [thread:$0]  %s0, 512, %s15, [#allocation3]
    $region5: #{tpu_custom_call.1} parent=1 // pred_fallthru
      _
    // Predicated region
    $region6: #{tpu_custom_call.1} parent=1 // pred_check
      _
    $region7: #{tpu_custom_call.1} parent=1 // pred_check_branch
      %19 = sbr.rel (0) target = $region9
    $region8: #{tpu_custom_call.1} parent=1 // pred_region
      %20 = dma.done [#allocation3], 512
    $region9: #{tpu_custom_call.1} parent=1 // pred_fallthru
      _
    %v21 = vld [vmem:[#allocation2] sm:$0xff]
    %v22 = vld [vmem:[#allocation2 + $0x8] sm:$0xff]
    %v23 = vld [vmem:[#allocation2 + $0x10] sm:$0xff]
    %v24 = vld [vmem:[#allocation2 + $0x18] sm:$0xff]
    %v25 = vsub.f32 1.0, %v21
    %v26 = vsub.f32 1.0, %v22
    %v27 = vsub.f32 1.0, %v23
    %v28 = vsub.f32 1.0, %v24
    %v29 = vlog2.pop %v25
    %v30 = vmul.f32 %v29, 0.6931472
    %v31 = vlog2.pop %v26
    %v32 = vmul.f32 %v31, 0.6931472
    %v33 = vlog2.pop %v27
    %v34 = vmul.f32 %v33, 0.6931472
    %v35 = vlog2.pop %v28
    %v36 = vmul.f32 %v35, 0.6931472
    %v37 = vsub.f32 0.0, %v30
    %v38 = vsub.f32 0.0, %v32
    %v39 = vsub.f32 0.0, %v34
    %v40 = vsub.f32 0.0, %v36
    %v41 = vadd.f32 %v37, 0.0
    %v42 = vadd.f32 %v38, 0.0
    %v43 = vadd.f32 %v39, 0.0
    %v44 = vadd.f32 %v40, 0.0
    %45 = vst [vmem:[#allocation5] sm:$0xff] %v41
    %46 = vst [vmem:[#allocation5 + $0x8] sm:$0xff] %v42
    %47 = vst [vmem:[#allocation5 + $0x10] sm:$0xff] %v43
    %48 = vst [vmem:[#allocation5 + $0x18] sm:$0xff] %v44
    // Predicated region
    $region10: #{tpu_custom_call.1} parent=1 // pred_check
      _
    $region11: #{tpu_custom_call.1} parent=1 // pred_check_branch
      %50 = sbr.rel (0) target = $region13
    $region12: #{tpu_custom_call.1} parent=1 // pred_region
      %s52 = ssub.s32 512, 512
      %53 = vsyncadd [#allocation4], %s52
      %s55 = sshll.u32 [#allocation5], 4
      %s56 = int_to_ptr.vmem [resolvable:$true] %s55
      %58 = dma.vmem_to_hbm [thread:$0]  %s56, 512, %s1, [#allocation4]
    $region13: #{tpu_custom_call.1} parent=1 // pred_fallthru
      _
    // Predicated region
    $region14: #{tpu_custom_call.1} parent=1 // pred_check
      _
    $region15: #{tpu_custom_call.1} parent=1 // pred_check_branch
      %60 = sbr.rel (0) target = $region17
    $region16: #{tpu_custom_call.1} parent=1 // pred_region
      %61 = dma.done [#allocation4], 512
    $region17: #{tpu_custom_call.1} parent=1 // pred_fallthru
      _
    %62 = vsyncpa [#allocation3], 1
    %63 = vsyncpa [#allocation4], 1

</llo_original>
